<compile_context>
chip_gen: v5e
topology: v5e:2x2
jax: 0.10.0
libtpu: 0.0.40
codegen_flags: <defaults>
</compile_context>

<pallas_src>
import functools

import numpy as np
import jax
import jax.numpy as jnp
from jax.experimental import pallas as pl
from jax.experimental.pallas import tpu as pltpu

# ---------------------------------------------------------------------------
# ZBL constants (identical to the PyTorch module / LAMMPS pair_style zbl)
# ---------------------------------------------------------------------------
_P = 0.23
_A0 = 0.4685
_C = (0.02817, 0.28022, 0.50986, 0.18175)
_D = (0.20162, 0.4029, 0.94229, 3.1998)
_QQR2E = 14.399645478425668
_R1 = 0.0  # inner cutoff is 0 in this module, so (rc - r1) == rc

_LANE = 128
_MAX_BLOCK_ROWS = 2048  # 2x f32 inputs + f32 output, double-buffered ≈ 6 MiB/step


# ---------------------------------------------------------------------------
# Pallas kernel: pairwise ZBL energy (elementwise over pairs)
# ---------------------------------------------------------------------------
def _zbl_pair_kernel(r_ref, p_ref, e_ref, *, coef):
    """Elementwise ZBL pair energy.

    r_ref : (block_rows, 128) f32  pair distances rij
    p_ref : (block_rows, 128) i32  unordered species-pair index
    coef  : static tuple, one entry per distinct species pair:
            (1/a, 0.5*factor, 0.5*A/3, 0.5*B/4, 0.5*C, rc) as python floats,
            baked as constants at trace time (no extra HBM/VMEM traffic).
    """
    r = r_ref[...]
    pidx = p_ref[...]

    n = len(coef)
    masks = [pidx == k for k in range(n - 1)]  # last entry is the chain default

    def lut(col):
        acc = jnp.full_like(r, coef[n - 1][col])
        for k in range(n - 2, -1, -1):
            acc = jnp.where(masks[k], coef[k][col], acc)
        return acc

    inv_a = lut(0)   # (zi^p + zj^p) / a0
    fac = lut(1)     # 0.5 * qqr2e * zi * zj
    a3 = lut(2)      # 0.5 * A / 3
    b4 = lut(3)      # 0.5 * B / 4
    c0 = lut(4)      # 0.5 * C
    rc = lut(5)      # outer cutoff (sum of covalent radii)

    # Approx EUP reciprocal + one Newton step ≈ f32-accurate 1/r, shorter
    # EUP+VALU chain than an exact divide.  r == 0 is unguarded (matches torch).
    inv_r = pl.reciprocal(r, approx=True)
    inv_r = inv_r * (2.0 - r * inv_r)

    # 4-term screening function at rij: 4 transcendentals per pair total.
    x = r * inv_a
    phi = _C[0] * jnp.exp(-_D[0] * x)
    phi = phi + _C[1] * jnp.exp(-_D[1] * x)
    phi = phi + _C[2] * jnp.exp(-_D[2] * x)
    phi = phi + _C[3] * jnp.exp(-_D[3] * x)

    e = fac * inv_r * phi
    r3 = r * r * r
    e = e + r3 * (a3 + b4 * r) + c0          # switching polynomial (r1 == 0)
    e_ref[...] = jnp.where(r > rc, jnp.zeros_like(e), e)


def pairwise_zbl_pallas(rij, pidx, coef):
    """Per-pair ZBL energies. rij f32[P], pidx int32[P], coef static tuple."""
    P = rij.shape[0]
    rows_needed = max(1, -(-P // _LANE))
    if rows_needed <= 8:
        block_rows = 8
    else:
        # Aim for >= 2 grid steps so ("parallel",) can shard across the two
        # TensorCores on v7x; cap the per-step block at _MAX_BLOCK_ROWS.
        half = -(-rows_needed // 2)
        block_rows = min(_MAX_BLOCK_ROWS, ((half + 7) // 8) * 8)
    n_blocks = -(-rows_needed // block_rows)
    rows = n_blocks * block_rows
    pad = rows * _LANE - P

    # Pad lanes: r = 1e3 >> any rc so the in-kernel cutoff mask zeroes them and
    # all intermediates stay finite; pidx = 0 is a valid table entry.  The pad
    # lanes are sliced away before the segment sum anyway.
    r2d = jnp.pad(rij.astype(jnp.float32), (0, pad),
                  constant_values=1e3).reshape(rows, _LANE)
    p2d = jnp.pad(pidx.astype(jnp.int32), (0, pad),
                  constant_values=0).reshape(rows, _LANE)

    e = pl.pallas_call(
        functools.partial(_zbl_pair_kernel, coef=coef),
        out_shape=jax.ShapeDtypeStruct((rows, _LANE), jnp.float32),
        grid=(n_blocks,),
        in_specs=[pl.BlockSpec((block_rows, _LANE), lambda i: (i, 0)),
                  pl.BlockSpec((block_rows, _LANE), lambda i: (i, 0))],
        out_specs=pl.BlockSpec((block_rows, _LANE), lambda i: (i, 0)),
        compiler_params=pltpu.CompilerParams(
            dimension_semantics=("parallel",)),
    )(r2d, p2d)
    return e.reshape(rows * _LANE)[:P]


# ---------------------------------------------------------------------------
# Pure-JAX reference (mirrors the PyTorch math exactly, for verification)
# ---------------------------------------------------------------------------
def _pairwise_zbl_ref(zi, zj, rij, rc):
    c = jnp.asarray(_C, dtype=rij.dtype)
    d = jnp.asarray(_D, dtype=rij.dtype)
    a = _A0 / (zi ** _P + zj ** _P)
    da = d[:, None] / a[None, :]
    factor = _QQR2E * zi * zj

    def phi(r):
        return jnp.sum(c[:, None] * jnp.exp(-r * da), axis=0)

    def dphi(r):
        return jnp.sum(-c[:, None] * da * jnp.exp(-r * da), axis=0)

    def d2phi(r):
        return jnp.sum(c[:, None] * da ** 2 * jnp.exp(-r * da), axis=0)

    e = factor / rij * phi(rij)
    ec = factor / rc * phi(rc)
    dec = factor / rc * (-phi(rc) / rc + dphi(rc))
    d2ec = factor / rc * (d2phi(rc) - 2.0 / rc * dphi(rc) + 2.0 * phi(rc) / rc ** 2)
    A = (-3.0 * dec + rc * d2ec) / rc ** 2
    B = (2.0 * dec - rc * d2ec) / rc ** 3
    C = -ec + rc * dec / 2.0 - rc * rc * d2ec / 12.0
    e = e + A / 3.0 * rij ** 3 + B / 4.0 * rij ** 4 + C
    e = e / 2.0
    return jnp.where(rij > rc, 0.0, e)


# ---------------------------------------------------------------------------
# ZBL "module": deterministic parameter setup + forward pass
# ---------------------------------------------------------------------------
class ZBLJax:
    def __init__(self, atomic_types):
        # Covalent radii (ASE values, hardcoded deterministically in-script).
        _ASE_RADII = {1: 0.31, 6: 0.76, 7: 0.71, 8: 0.66}
        self.atomic_types = sorted(atomic_types)
        n = len(self.atomic_types)
        self.n_types = n

        s2i = np.full((max(self.atomic_types) + 1,), -1, dtype=np.int32)
        radii = np.zeros((n,), dtype=np.float64)
        z = np.zeros((n,), dtype=np.float64)
        for i, t in enumerate(self.atomic_types):
            s2i[t] = i
            radii[i] = _ASE_RADII.get(t, 0.2)
            z[i] = float(t)
        self.species_to_index = jnp.asarray(s2i)
        self.covalent_radii = jnp.asarray(radii.astype(np.float32))
        self.cutoff_radius = 2.0 * float(radii.max())

        # --- per-(unordered)-species-pair table, computed in float64 on host --
        # Columns: [1/a, 0.5*factor, 0.5*A/3, 0.5*B/4, 0.5*C, rc]
        c = np.asarray(_C, np.float64)
        d = np.asarray(_D, np.float64)
        entries = []
        for lo in range(n):
            for hi in range(lo, n):
                zi_, zj_ = z[lo], z[hi]
                a = _A0 / (zi_ ** _P + zj_ ** _P)
                factor = _QQR2E * zi_ * zj_
                rc = radii[lo] + radii[hi]
                da = d / a
                ex = np.exp(-rc * da)
                phi = np.sum(c * ex)
                dphi = np.sum(-c * da * ex)
                d2phi = np.sum(c * da ** 2 * ex)
                ec = factor / rc * phi
                dec = factor / rc * (-phi / rc + dphi)
                d2ec = factor / rc * (d2phi - 2.0 / rc * dphi + 2.0 * phi / rc ** 2)
                A = (-3.0 * dec + rc * d2ec) / rc ** 2
                B = (2.0 * dec - rc * d2ec) / rc ** 3
                Cc = -ec + rc * dec / 2.0 - rc * rc * d2ec / 12.0
                entries.append([1.0 / a, 0.5 * factor, 0.5 * A / 3.0,
                                0.5 * B / 4.0, 0.5 * Cc, rc])
        tab = np.asarray(entries, dtype=np.float32)
        # Static constants baked into the kernel closure.
        self._coef = tuple(tuple(float(v) for v in row) for row in tab)
        # rc per pair index (verification aux output only).
        self._rc_table = jnp.asarray(tab[:, 5])

        # jit the whole hot path (gathers, distances, pad, kernel, segment sum)
        self._forward_jit = jax.jit(self._forward_impl)

    def _forward_impl(self, positions, types, first_atom, second_atom):
        n_atoms = positions.shape[0]
        si = self.species_to_index[types[first_atom]]
        sj = self.species_to_index[types[second_atom]]
        lo = jnp.minimum(si, sj)
        hi = jnp.maximum(si, sj)
        # unordered-pair index into the triangular coefficient table
        pidx = lo * self.n_types - (lo * (lo + 1)) // 2 + hi

        rij = jnp.sqrt(
            jnp.sum((positions[first_atom] - positions[second_atom]) ** 2, axis=-1)
        )

        # --- hot path: Pallas kernel streams 8 B/pair in, 4 B/pair out ---
        e_pair = pairwise_zbl_pallas(rij, pidx, self._coef)

        # index_add_ equivalent; first_atom from the 'ij' meshgrid is sorted.
        # TODO(synk): per-atom scatter kept in plain XLA (sorted segment_sum);
        # no clean TPU-Pallas scatter.
        e_nodes = jax.ops.segment_sum(
            e_pair, first_atom, num_segments=n_atoms, indices_are_sorted=True)

        # aux outputs used only for verification in __main__
        zi = types[first_atom].astype(jnp.float32)
        zj = types[second_atom].astype(jnp.float32)
        rc = self._rc_table[pidx]
        return e_nodes.reshape(-1, 1), (zi, zj, rij, rc, first_atom)

    def forward(self, positions, types):
        """positions: (n_atoms, 3) f32, types: (n_atoms,) int32 atomic numbers.

        Returns per-atom ZBL energies of shape (n_atoms, 1)  (per_atom=True).
        """
        n_atoms = positions.shape[0]
        # Full neighbor list over all ordered i != j pairs (host glue, static
        # for a given n_atoms).  Pairs with rij > rc contribute exactly 0 in
        # get_pairwise_zbl and rc <= cutoff, so this is equivalent to the
        # strict-cutoff neighbor list the PyTorch module requests.
        # TODO(synk): for large systems a real cutoff neighbor list is needed;
        # the dense O(n^2) list is demo glue only.
        ii, jj = np.meshgrid(np.arange(n_atoms), np.arange(n_atoms), indexing="ij")
        m = ii != jj
        first_atom = jnp.asarray(ii[m].astype(np.int32))
        second_atom = jnp.asarray(jj[m].astype(np.int32))
        return self._forward_jit(positions, types, first_atom, second_atom)


if __name__ == "__main__":
    key = jax.random.PRNGKey(0)
    k_pos, k_typ = jax.random.split(key)

    n_atoms = 16
    atomic_types = [1, 6, 8]  # H, C, O
    model = ZBLJax(atomic_types)

    # Small box (~3 Å) so several pairs fall inside rc.
    positions = jax.random.uniform(k_pos, (n_atoms, 3), dtype=jnp.float32) * 3.0
    types = jnp.asarray(atomic_types, dtype=jnp.int32)[
        jax.random.randint(k_typ, (n_atoms,), 0, len(atomic_types))
    ]

    e_per_atom, (zi, zj, rij, rc, first_atom) = model.forward(positions, types)
    e_per_atom = jax.block_until_ready(e_per_atom)

    # Verify against the pure-JAX reference of the PyTorch math.
    e_pair_ref = _pairwise_zbl_ref(zi, zj, rij, rc)
    e_ref = jnp.zeros((n_atoms,), jnp.float32).at[first_atom].add(e_pair_ref)
    e_ref = e_ref.reshape(-1, 1)
    assert e_per_atom.shape == (n_atoms, 1)
    assert jnp.allclose(e_per_atom, e_ref, rtol=1e-4, atol=2e-4), (
        "mismatch vs reference"
    )

    print("KERNEL_OK")
</pallas_src>

<mosaic_0001>
module attributes {stable_mosaic.version = 11 : i64} {
  func.func @_zbl_pair_kernel(%arg0: i32, %arg1: memref<8x128xf32, #tpu.memory_space<vmem>>, %arg2: memref<8x128xi32, #tpu.memory_space<vmem>>, %arg3: memref<8x128xf32, #tpu.memory_space<vmem>>) attributes {dimension_semantics = [#tpu.dimension_semantics<parallel>], iteration_bounds = array<i64: 1>, scalar_prefetch = 0 : i64, scratch_operands = 0 : i64, tpu.core_type = #tpu.core_type<tc>, window_params = [{transform_indices = @transform_0, window_bounds = array<i64: 8, 128>}, {transform_indices = @transform_1, window_bounds = array<i64: 8, 128>}, {transform_indices = @transform_2, window_bounds = array<i64: 8, 128>}]} {
    %c0 = arith.constant 0 : index
    %c0_0 = arith.constant 0 : index
    %0 = vector.load %arg1[%c0, %c0_0] : memref<8x128xf32, #tpu.memory_space<vmem>>, vector<8x128xf32>
    %c0_1 = arith.constant 0 : index
    %c0_2 = arith.constant 0 : index
    %1 = vector.load %arg2[%c0_1, %c0_2] : memref<8x128xi32, #tpu.memory_space<vmem>>, vector<8x128xi32>
    %c0_i32 = arith.constant 0 : i32
    %2 = vector.broadcast %c0_i32 : i32 to vector<8x128xi32>
    %3 = arith.cmpi eq, %1, %2 : vector<8x128xi32>
    %c1_i32 = arith.constant 1 : i32
    %4 = vector.broadcast %c1_i32 : i32 to vector<8x128xi32>
    %5 = arith.cmpi eq, %1, %4 : vector<8x128xi32>
    %c2_i32 = arith.constant 2 : i32
    %6 = vector.broadcast %c2_i32 : i32 to vector<8x128xi32>
    %7 = arith.cmpi eq, %1, %6 : vector<8x128xi32>
    %c3_i32 = arith.constant 3 : i32
    %8 = vector.broadcast %c3_i32 : i32 to vector<8x128xi32>
    %9 = arith.cmpi eq, %1, %8 : vector<8x128xi32>
    %c4_i32 = arith.constant 4 : i32
    %10 = vector.broadcast %c4_i32 : i32 to vector<8x128xi32>
    %11 = arith.cmpi eq, %1, %10 : vector<8x128xi32>
    %cst = arith.constant 6.88701629 : f32
    %12 = vector.broadcast %cst : f32 to vector<8x128xf32>
    %cst_3 = arith.constant 6.66654444 : f32
    %13 = vector.broadcast %cst_3 : f32 to vector<8x128xf32>
    %14 = arith.select %11, %13, %12 : vector<8x128xi1>, vector<8x128xf32>
    %cst_4 = arith.constant 6.44607257 : f32
    %15 = vector.broadcast %cst_4 : f32 to vector<8x128xf32>
    %16 = arith.select %9, %15, %14 : vector<8x128xi1>, vector<8x128xf32>
    %cst_5 = arith.constant 5.57797956 : f32
    %17 = vector.broadcast %cst_5 : f32 to vector<8x128xf32>
    %18 = arith.select %7, %17, %16 : vector<8x128xi1>, vector<8x128xf32>
    %cst_6 = arith.constant 5.35750818 : f32
    %19 = vector.broadcast %cst_6 : f32 to vector<8x128xf32>
    %20 = arith.select %5, %19, %18 : vector<8x128xi1>, vector<8x128xf32>
    %cst_7 = arith.constant 4.26894331 : f32
    %21 = vector.broadcast %cst_7 : f32 to vector<8x128xf32>
    %22 = arith.select %3, %21, %20 : vector<8x128xi1>, vector<8x128xf32>
    %cst_8 = arith.constant 460.788666 : f32
    %23 = vector.broadcast %cst_8 : f32 to vector<8x128xf32>
    %cst_9 = arith.constant 345.591492 : f32
    %24 = vector.broadcast %cst_9 : f32 to vector<8x128xf32>
    %25 = arith.select %11, %24, %23 : vector<8x128xi1>, vector<8x128xf32>
    %cst_10 = arith.constant 259.193604 : f32
    %26 = vector.broadcast %cst_10 : f32 to vector<8x128xf32>
    %27 = arith.select %9, %26, %25 : vector<8x128xi1>, vector<8x128xf32>
    %cst_11 = arith.constant 57.5985832 : f32
    %28 = vector.broadcast %cst_11 : f32 to vector<8x128xf32>
    %29 = arith.select %7, %28, %27 : vector<8x128xi1>, vector<8x128xf32>
    %cst_12 = arith.constant 43.1989365 : f32
    %30 = vector.broadcast %cst_12 : f32 to vector<8x128xf32>
    %31 = arith.select %5, %30, %29 : vector<8x128xi1>, vector<8x128xf32>
    %cst_13 = arith.constant 7.1998229 : f32
    %32 = vector.broadcast %cst_13 : f32 to vector<8x128xf32>
    %33 = arith.select %3, %32, %31 : vector<8x128xi1>, vector<8x128xf32>
    %cst_14 = arith.constant 17.9529762 : f32
    %34 = vector.broadcast %cst_14 : f32 to vector<8x128xf32>
    %cst_15 = arith.constant 9.164850e+00 : f32
    %35 = vector.broadcast %cst_15 : f32 to vector<8x128xf32>
    %36 = arith.select %11, %35, %34 : vector<8x128xi1>, vector<8x128xf32>
    %cst_16 = arith.constant 4.82737494 : f32
    %37 = vector.broadcast %cst_16 : f32 to vector<8x128xf32>
    %38 = arith.select %9, %37, %36 : vector<8x128xi1>, vector<8x128xf32>
    %cst_17 = arith.constant 2.039190e+01 : f32
    %39 = vector.broadcast %cst_17 : f32 to vector<8x128xf32>
    %40 = arith.select %7, %39, %38 : vector<8x128xi1>, vector<8x128xf32>
    %cst_18 = arith.constant 9.41433238 : f32
    %41 = vector.broadcast %cst_18 : f32 to vector<8x128xf32>
    %42 = arith.select %5, %41, %40 : vector<8x128xi1>, vector<8x128xf32>
    %cst_19 = arith.constant 36.3775635 : f32
    %43 = vector.broadcast %cst_19 : f32 to vector<8x128xf32>
    %44 = arith.select %3, %43, %42 : vector<8x128xi1>, vector<8x128xf32>
    %cst_20 = arith.constant -8.84307098 : f32
    %45 = vector.broadcast %cst_20 : f32 to vector<8x128xf32>
    %cst_21 = arith.constant -4.20336151 : f32
    %46 = vector.broadcast %cst_21 : f32 to vector<8x128xf32>
    %47 = arith.select %11, %46, %45 : vector<8x128xi1>, vector<8x128xf32>
    %cst_22 = arith.constant -2.07130766 : f32
    %48 = vector.broadcast %cst_22 : f32 to vector<8x128xf32>
    %49 = arith.select %9, %48, %47 : vector<8x128xi1>, vector<8x128xf32>
    %cst_23 = arith.constant -1.342760e+01 : f32
    %50 = vector.broadcast %cst_23 : f32 to vector<8x128xf32>
    %51 = arith.select %7, %50, %49 : vector<8x128xi1>, vector<8x128xf32>
    %cst_24 = arith.constant -5.62919617 : f32
    %52 = vector.broadcast %cst_24 : f32 to vector<8x128xf32>
    %53 = arith.select %5, %52, %51 : vector<8x128xi1>, vector<8x128xf32>
    %cst_25 = arith.constant -36.6934586 : f32
    %54 = vector.broadcast %cst_25 : f32 to vector<8x128xf32>
    %55 = arith.select %3, %54, %53 : vector<8x128xi1>, vector<8x128xf32>
    %cst_26 = arith.constant -1.856120e+01 : f32
    %56 = vector.broadcast %cst_26 : f32 to vector<8x128xf32>
    %cst_27 = arith.constant -11.6888447 : f32
    %57 = vector.broadcast %cst_27 : f32 to vector<8x128xf32>
    %58 = arith.select %11, %57, %56 : vector<8x128xi1>, vector<8x128xf32>
    %cst_28 = arith.constant -7.49326849 : f32
    %59 = vector.broadcast %cst_28 : f32 to vector<8x128xf32>
    %60 = arith.select %9, %59, %58 : vector<8x128xi1>, vector<8x128xf32>
    %cst_29 = arith.constant -9.35160541 : f32
    %61 = vector.broadcast %cst_29 : f32 to vector<8x128xf32>
    %62 = arith.select %7, %61, %60 : vector<8x128xi1>, vector<8x128xf32>
    %cst_30 = arith.constant -5.72845554 : f32
    %63 = vector.broadcast %cst_30 : f32 to vector<8x128xf32>
    %64 = arith.select %5, %63, %62 : vector<8x128xi1>, vector<8x128xf32>
    %cst_31 = arith.constant -5.04930496 : f32
    %65 = vector.broadcast %cst_31 : f32 to vector<8x128xf32>
    %66 = arith.select %3, %65, %64 : vector<8x128xi1>, vector<8x128xf32>
    %cst_32 = arith.constant 1.320000e+00 : f32
    %67 = vector.broadcast %cst_32 : f32 to vector<8x128xf32>
    %cst_33 = arith.constant 1.420000e+00 : f32
    %68 = vector.broadcast %cst_33 : f32 to vector<8x128xf32>
    %69 = arith.select %11, %68, %67 : vector<8x128xi1>, vector<8x128xf32>
    %cst_34 = arith.constant 1.520000e+00 : f32
    %70 = vector.broadcast %cst_34 : f32 to vector<8x128xf32>
    %71 = arith.select %9, %70, %69 : vector<8x128xi1>, vector<8x128xf32>
    %cst_35 = arith.constant 9.700000e-01 : f32
    %72 = vector.broadcast %cst_35 : f32 to vector<8x128xf32>
    %73 = arith.select %7, %72, %71 : vector<8x128xi1>, vector<8x128xf32>
    %cst_36 = arith.constant 1.070000e+00 : f32
    %74 = vector.broadcast %cst_36 : f32 to vector<8x128xf32>
    %75 = arith.select %5, %74, %73 : vector<8x128xi1>, vector<8x128xf32>
    %cst_37 = arith.constant 6.200000e-01 : f32
    %76 = vector.broadcast %cst_37 : f32 to vector<8x128xf32>
    %77 = arith.select %3, %76, %75 : vector<8x128xi1>, vector<8x128xf32>
    %78 = tpu.reciprocal %0 {approx = true} : vector<8x128xf32> -> vector<8x128xf32>
    %79 = arith.mulf %0, %78 : vector<8x128xf32>
    %cst_38 = arith.constant 2.000000e+00 : f32
    %80 = vector.broadcast %cst_38 : f32 to vector<8x128xf32>
    %81 = arith.subf %80, %79 : vector<8x128xf32>
    %82 = arith.mulf %78, %81 : vector<8x128xf32>
    %83 = arith.mulf %0, %22 : vector<8x128xf32>
    %cst_39 = arith.constant -2.016200e-01 : f32
    %84 = vector.broadcast %cst_39 : f32 to vector<8x128xf32>
    %85 = arith.mulf %84, %83 : vector<8x128xf32>
    %86 = math.exp %85 : vector<8x128xf32>
    %cst_40 = arith.constant 2.817000e-02 : f32
    %87 = vector.broadcast %cst_40 : f32 to vector<8x128xf32>
    %88 = arith.mulf %87, %86 : vector<8x128xf32>
    %cst_41 = arith.constant -4.029000e-01 : f32
    %89 = vector.broadcast %cst_41 : f32 to vector<8x128xf32>
    %90 = arith.mulf %89, %83 : vector<8x128xf32>
    %91 = math.exp %90 : vector<8x128xf32>
    %cst_42 = arith.constant 2.802200e-01 : f32
    %92 = vector.broadcast %cst_42 : f32 to vector<8x128xf32>
    %93 = arith.mulf %92, %91 : vector<8x128xf32>
    %94 = arith.addf %88, %93 : vector<8x128xf32>
    %cst_43 = arith.constant -9.422900e-01 : f32
    %95 = vector.broadcast %cst_43 : f32 to vector<8x128xf32>
    %96 = arith.mulf %95, %83 : vector<8x128xf32>
    %97 = math.exp %96 : vector<8x128xf32>
    %cst_44 = arith.constant 5.098600e-01 : f32
    %98 = vector.broadcast %cst_44 : f32 to vector<8x128xf32>
    %99 = arith.mulf %98, %97 : vector<8x128xf32>
    %100 = arith.addf %94, %99 : vector<8x128xf32>
    %cst_45 = arith.constant -3.199800e+00 : f32
    %101 = vector.broadcast %cst_45 : f32 to vector<8x128xf32>
    %102 = arith.mulf %101, %83 : vector<8x128xf32>
    %103 = math.exp %102 : vector<8x128xf32>
    %cst_46 = arith.constant 1.817500e-01 : f32
    %104 = vector.broadcast %cst_46 : f32 to vector<8x128xf32>
    %105 = arith.mulf %104, %103 : vector<8x128xf32>
    %106 = arith.addf %100, %105 : vector<8x128xf32>
    %107 = arith.mulf %33, %82 : vector<8x128xf32>
    %108 = arith.mulf %107, %106 : vector<8x128xf32>
    %109 = arith.mulf %0, %0 : vector<8x128xf32>
    %110 = arith.mulf %109, %0 : vector<8x128xf32>
    %111 = arith.mulf %55, %0 : vector<8x128xf32>
    %112 = arith.addf %44, %111 : vector<8x128xf32>
    %113 = arith.mulf %110, %112 : vector<8x128xf32>
    %114 = arith.addf %108, %113 : vector<8x128xf32>
    %115 = arith.addf %114, %66 : vector<8x128xf32>
    %116 = arith.cmpf ogt, %0, %77 : vector<8x128xf32>
    %cst_47 = arith.constant 0.000000e+00 : f32
    %117 = vector.broadcast %cst_47 : f32 to vector<8x128xf32>
    %118 = arith.select %116, %117, %115 : vector<8x128xi1>, vector<8x128xf32>
    %c0_48 = arith.constant 0 : index
    %c0_49 = arith.constant 0 : index
    %119 = vector.load %arg3[%c0_48, %c0_49] : memref<8x128xf32, #tpu.memory_space<vmem>>, vector<8x128xf32>
    tpu.vector_store %arg3[%c0_48, %c0_49], %118 {strides = array<i32>} : memref<8x128xf32, #tpu.memory_space<vmem>>, vector<8x128xf32>,
    return
  }
  func.func @transform_0(%arg0: i32) -> (i32, i32) {
    %c0_i32 = arith.constant 0 : i32
    %c0_i32_0 = arith.constant 0 : i32
    return %arg0, %c0_i32 : i32, i32
  }
  func.func @transform_1(%arg0: i32) -> (i32, i32) {
    %c0_i32 = arith.constant 0 : i32
    %c0_i32_0 = arith.constant 0 : i32
    return %arg0, %c0_i32 : i32, i32
  }
  func.func @transform_2(%arg0: i32) -> (i32, i32) {
    %c0_i32 = arith.constant 0 : i32
    %c0_i32_0 = arith.constant 0 : i32
    return %arg0, %c0_i32 : i32, i32
  }
}

</mosaic_0001>

<llo_original>
// kernel: _forward_impl.1
$region0: #{_forward_impl.1}
  #allocation0 [shape = 'u32[]', space=smem, size = 0x4, offset = 0x4, fixed_abs, tag = 'smem constant byte address 0x4 - core index']
  #allocation1 [shape = 'u32[72,128]{1,0:T(1,128)}', space=vmem, size = 0x9000, scoped, tag = 'internal scratch']
  %s0 = inlined_call_operand.vmem [shape: f32[8,128], index: 0, kind: input, shape index: {}]
  %s1 = inlined_call_operand.vmem [shape: s32[8,128], index: 1, kind: input, shape index: {}]
  %s2 = inlined_call_operand.vmem [shape: f32[8,128], index: 2, kind: output, shape index: {}]
  %s3 = sld [smem:[#allocation0]]
  $region18: #{_forward_impl.1} parent=0
    _
  %s5 = ssub.s32 1, %s3
  %s6 = scalar_select 0, %s5, %s3
  // Predicated region
  $region2: #{_forward_impl.1} parent=0 // pred_check
    _
  $region3: #{_forward_impl.1} parent=0 // pred_check_branch
    %8 = sbr.rel (0) target = $region5
  $region4: #{_forward_impl.1} parent=0 // pred_region
    _
  $region5: #{_forward_impl.1} parent=0 // pred_fallthru
    _
  // Predicated region
  $region6: #{_forward_impl.1} parent=0 // pred_check
    _
  $region7: #{_forward_impl.1} parent=0 // pred_check_branch
    %10 = sbr.rel (0) target = $region9
  $region8: #{_forward_impl.1} parent=0 // pred_region
    _
  $region9: #{_forward_impl.1} parent=0 // pred_fallthru
    _
  %v11 = vld [vmem:[%s0] sm:$0xff]
  %v12 = vld [vmem:[%s1] sm:$0xff]
  %vm13 = vcmp.eq.s32.totalorder %v12, 0
  %vm14 = vcmp.eq.s32.totalorder %v12, 1
  %vm15 = vcmp.eq.s32.totalorder %v12, 2
  %vm16 = vcmp.eq.s32.totalorder %v12, 3
  %vm17 = vcmp.eq.s32.totalorder %v12, 4
  %v18 = vsel %vm17, 6.6665444, 6.8870163
  %v19 = vsel %vm16, 6.4460726, %v18
  %v20 = vsel %vm15, 5.5779796, %v19
  %v21 = vsel %vm14, 5.357508, %v20
  %v22 = vsel %vm13, 4.2689433, %v21
  %v23 = vsel %vm17, 345.5915, 460.78867
  %v24 = vsel %vm16, 259.1936, %v23
  %v25 = vsel %vm15, 57.598583, %v24
  %v26 = vsel %vm14, 43.198936, %v25
  %v27 = vsel %vm13, 7.199823, %v26
  %v28 = vsel %vm17, 9.16485, 17.952976
  %v29 = vsel %vm16, 4.827375, %v28
  %v30 = vsel %vm15, 20.3919, %v29
  %v31 = vsel %vm14, 9.414332, %v30
  %v32 = vsel %vm13, 36.377563, %v31
  %v33 = vsel %vm17, -4.2033615, -8.843071
  %v34 = vsel %vm16, -2.0713077, %v33
  %v35 = vsel %vm15, -13.4276, %v34
  %v36 = vsel %vm14, -5.629196, %v35
  %v37 = vsel %vm13, -36.69346, %v36
  %v38 = vsel %vm17, -11.688845, -18.5612
  %v39 = vsel %vm16, -7.4932685, %v38
  %v40 = vsel %vm15, -9.351605, %v39
  %v41 = vsel %vm14, -5.7284555, %v40
  %v42 = vsel %vm13, -5.049305, %v41
  %v43 = vsel %vm17, 1.42, 1.32
  %v44 = vsel %vm16, 1.52, %v43
  %v45 = vsel %vm15, 0.97, %v44
  %v46 = vsel %vm14, 1.07, %v45
  %v47 = vsel %vm13, 0.62, %v46
  %v48 = vrcp.pop %v11
  %v49 = vmul.f32 %v11, %v48
  %v50 = vsub.f32 2.0, %v49
  %v51 = vmul.f32 %v48, %v50
  %v52 = vmul.f32 %v11, %v22
  %v53 = vmul.f32 %v52, -0.20162
  %v54 = vmul.f32 %v53, 1.442695
  %v55 = vpow.pop %v54
  %v56 = vmul.f32 %v55, 0.02817
  %v57 = vmul.f32 %v52, -0.4029
  %v58 = vmul.f32 %v57, 1.442695
  %v59 = vpow.pop %v58
  %v60 = vmul.f32 %v59, 0.28022
  %v61 = vadd.f32 %v56, %v60
  %v62 = vmul.f32 %v52, -0.94229
  %v63 = vmul.f32 %v62, 1.442695
  %v64 = vpow.pop %v63
  %v65 = vmul.f32 %v64, 0.50986
  %v66 = vadd.f32 %v61, %v65
  %v67 = vmul.f32 %v52, -3.1998
  %v68 = vmul.f32 %v67, 1.442695
  %v69 = vpow.pop %v68
  %v70 = vmul.f32 %v69, 0.18175
  %v71 = vadd.f32 %v66, %v70
  %v72 = vmul.f32 %v27, %v51
  %v73 = vmul.f32 %v72, %v71
  %v74 = vmul.f32 %v11, %v11
  %v75 = vmul.f32 %v74, %v11
  %v76 = vmul.f32 %v37, %v11
  %v77 = vadd.f32 %v32, %v76
  %v78 = vmul.f32 %v75, %v77
  %v79 = vadd.f32 %v73, %v78
  %v80 = vadd.f32 %v79, %v42
  %vm81 = vcmp.gt.f32.partialorder %v11, %v47
  %v82 = vsel %vm81, 0.0, %v80
  %83 = vst [vmem:[%s2] sm:$0xff] %v82
  // Predicated region
  $region10: #{_forward_impl.1} parent=0 // pred_check
    _
  $region11: #{_forward_impl.1} parent=0 // pred_check_branch
    %85 = sbr.rel (0) target = $region13
  $region12: #{_forward_impl.1} parent=0 // pred_region
    _
  $region13: #{_forward_impl.1} parent=0 // pred_fallthru
    _
  // Predicated region
  $region14: #{_forward_impl.1} parent=0 // pred_check
    _
  $region15: #{_forward_impl.1} parent=0 // pred_check_branch
    %87 = sbr.rel (0) target = $region17
  $region16: #{_forward_impl.1} parent=0 // pred_region
    _
  $region17: #{_forward_impl.1} parent=0 // pred_fallthru
    _

</llo_original>
